<compile_context>
chip_gen: v5e
topology: v5e:2x2
jax: 0.10.0
libtpu: 0.0.40
codegen_flags: <defaults>
</compile_context>

<pallas_src>
import jax
import jax.numpy as jnp
from jax.experimental import pallas as pl
from jax.experimental.pallas import tpu as pltpu

_NEG = -1e30  # finite "minus infinity" fill for padded lanes / rows


def _round_up(x, m):
    return (x + m - 1) // m * m


# ----------------------------------------------------------------------------
# Fused kernel factory.
# ----------------------------------------------------------------------------
def _make_kernel(distillation_type, alpha, tau, n_batch, n_classes):
    """n_batch / n_classes are the ORIGINAL (unpadded) sizes, used for scaling."""
    inv_b = 1.0 / n_batch

    def body(logits, labels, teacher, loss_ref):
        i = pl.program_id(0)

        # Zero the resident scalar accumulator on the first grid step.
        @pl.when(i == 0)
        def _():
            loss_ref[0, 0] = 0.0

        tb, cp = logits.shape
        class_iota = jax.lax.broadcasted_iota(jnp.int32, (tb, cp), 1)
        onehot = (class_iota == labels).astype(jnp.float32)  # padded rows: label=-1 -> all zero

        # Student log-softmax (padded lanes hold -1e30 -> exp()==0, no effect).
        m_s = jnp.max(logits, axis=-1, keepdims=True)
        s_s = logits - m_s
        log_p = s_s - jnp.log(jnp.sum(jnp.exp(s_s), axis=-1, keepdims=True))

        if distillation_type == "none":
            tile_loss = -jnp.sum(onehot * log_p) * inv_b

        elif distillation_type == "soft":
            base = -jnp.sum(onehot * log_p)

            inv_tau = 1.0 / tau  # tau > 0 assumed (as in the PyTorch module)
            # Student /tau log-softmax, reusing the row max computed above.
            s_st = s_s * inv_tau
            ls_s = s_st - jnp.log(jnp.sum(jnp.exp(s_st), axis=-1, keepdims=True))

            # Teacher /tau: keep exp & row-sum, derive both p_t and log p_t
            # without a second exp pass.
            m_t = jnp.max(teacher, axis=-1, keepdims=True)
            s_t = (teacher - m_t) * inv_tau
            e_t = jnp.exp(s_t)
            sum_t = jnp.sum(e_t, axis=-1, keepdims=True)
            ls_t = s_t - jnp.log(sum_t)

            # Mask padded batch rows (their KL contribution must be zero).
            row = i * tb + jax.lax.broadcasted_iota(jnp.int32, (tb, 1), 0)
            row_valid = (row < n_batch).astype(jnp.float32)
            p_t = e_t * (pl.reciprocal(sum_t, approx=True) * row_valid)

            kl = jnp.sum(p_t * (ls_t - ls_s))
            tile_loss = ((1.0 - alpha) * inv_b) * base + (
                alpha * tau * tau / (n_batch * n_classes)
            ) * kl

        else:  # "hard"
            # torch.argmax first-occurrence semantics: min index among maxima.
            t_max = jnp.max(teacher, axis=-1, keepdims=True)
            arg = jnp.min(
                jnp.where(teacher == t_max, class_iota, cp), axis=-1, keepdims=True
            )
            row = i * tb + jax.lax.broadcasted_iota(jnp.int32, (tb, 1), 0)
            row_valid = (row < n_batch).astype(jnp.float32)
            onehot_t = (class_iota == arg).astype(jnp.float32) * row_valid
            # Fold base CE and distillation CE into a single weighted reduction.
            w_comb = (1.0 - alpha) * onehot + alpha * onehot_t
            tile_loss = -jnp.sum(w_comb * log_p) * inv_b

        loss_ref[0, 0] += tile_loss

    if distillation_type == "none":
        def kernel(out_ref, lbl_ref, loss_ref):
            body(out_ref[...], lbl_ref[...], None, loss_ref)
    else:
        def kernel(x_ref, w_ref, b_ref, out_ref, lbl_ref, loss_ref):
            # Teacher forward fused in: MXU matmul straight out of resident VMEM.
            teacher = (
                jnp.dot(x_ref[...], w_ref[...], preferred_element_type=jnp.float32)
                + b_ref[...]
            )
            body(out_ref[...], lbl_ref[...], teacher, loss_ref)

    return kernel


# ----------------------------------------------------------------------------
# Wrapper: pad to TPU-friendly shapes, build grid, call the fused kernel.
# ----------------------------------------------------------------------------
def distillation_loss_module(inputs, outputs, labels, w_teacher, b_teacher, *,
                             distillation_type="soft", alpha=0.5, tau=2.0,
                             block_b=256, vmem_limit_bytes=32 * 1024 * 1024):
    """Full forward of DistillationLoss with a linear teacher (single kernel)."""
    assert distillation_type in ("none", "soft", "hard")
    B, C = outputs.shape
    Cp = _round_up(C, 128)                       # lane-dense class dim
    TB = min(block_b, _round_up(B, 8))           # batch tile, multiple of 8 sublanes
    Bp = pl.cdiv(B, TB) * TB
    nsteps = Bp // TB

    # Student logits: pad classes & rows with -1e30 (acts as -inf for softmax).
    outputs_p = jnp.pad(
        outputs.astype(jnp.float32), ((0, Bp - B), (0, Cp - C)), constant_values=_NEG
    )
    # Labels: padded rows get -1 -> one-hot never matches -> zero contribution.
    labels_p = jnp.pad(
        labels.astype(jnp.int32), (0, Bp - B), constant_values=-1
    ).reshape(Bp, 1)

    kernel = _make_kernel(distillation_type, float(alpha), float(tau), B, C)

    out_spec = pl.BlockSpec((1, 1), lambda i: (0, 0), memory_space=pltpu.SMEM)
    out_shape = jax.ShapeDtypeStruct((1, 1), jnp.float32)
    cparams = pltpu.CompilerParams(
        dimension_semantics=("arbitrary",),      # batch axis carries the accumulator
        vmem_limit_bytes=vmem_limit_bytes,
    )

    if distillation_type == "none":
        loss = pl.pallas_call(
            kernel,
            out_shape=out_shape,
            grid_spec=pltpu.PrefetchScalarGridSpec(
                num_scalar_prefetch=0,
                grid=(nsteps,),
                in_specs=[
                    pl.BlockSpec((TB, Cp), lambda i: (i, 0)),
                    pl.BlockSpec((TB, 1), lambda i: (i, 0)),
                ],
                out_specs=out_spec,
            ),
            compiler_params=cparams,
        )(outputs_p, labels_p)
    else:
        D = inputs.shape[1]
        x_p = jnp.pad(inputs.astype(jnp.float32), ((0, Bp - B), (0, 0)))
        w_p = jnp.pad(w_teacher.astype(jnp.float32), ((0, 0), (0, Cp - C)))
        # Padded teacher classes get -1e30 bias so they never win softmax/argmax.
        b_p = jnp.pad(
            b_teacher.astype(jnp.float32).reshape(1, C),
            ((0, 0), (0, Cp - C)),
            constant_values=_NEG,
        )
        loss = pl.pallas_call(
            kernel,
            out_shape=out_shape,
            grid_spec=pltpu.PrefetchScalarGridSpec(
                num_scalar_prefetch=0,
                grid=(nsteps,),
                in_specs=[
                    pl.BlockSpec((TB, D), lambda i: (i, 0)),   # x tile
                    pl.BlockSpec((D, Cp), lambda i: (0, 0)),   # W_t, resident
                    pl.BlockSpec((1, Cp), lambda i: (0, 0)),   # b_t, resident
                    pl.BlockSpec((TB, Cp), lambda i: (i, 0)),  # student logits tile
                    pl.BlockSpec((TB, 1), lambda i: (i, 0)),   # labels tile
                ],
                out_specs=out_spec,
            ),
            compiler_params=cparams,
        )(x_p, w_p, b_p, outputs_p, labels_p)

    return loss[0, 0]


# ----------------------------------------------------------------------------
# Pure-JAX reference (sanity check only).
# ----------------------------------------------------------------------------
def _ref(inputs, outputs, labels, w, b, distillation_type, alpha, tau):
    log_p = jax.nn.log_softmax(outputs, axis=1)
    base = -jnp.mean(jnp.take_along_axis(log_p, labels[:, None], axis=1))
    if distillation_type == "none":
        return base
    t = inputs @ w + b
    if distillation_type == "soft":
        ls_s = jax.nn.log_softmax(outputs / tau, axis=1)
        ls_t = jax.nn.log_softmax(t / tau, axis=1)
        kl = jnp.sum(jnp.exp(ls_t) * (ls_t - ls_s))
        dist = kl * tau * tau / outputs.size
    else:
        hard = jnp.argmax(t, axis=1)
        dist = -jnp.mean(jnp.take_along_axis(log_p, hard[:, None], axis=1))
    return base * (1.0 - alpha) + dist * alpha


if __name__ == "__main__":
    B, D, C = 8, 32, 16
    alpha, tau = 0.5, 2.0

    key = jax.random.PRNGKey(0)
    k_in, k_out, k_lbl, k_w, k_b = jax.random.split(key, 5)

    inputs = jax.random.normal(k_in, (B, D), dtype=jnp.float32)       # features
    outputs = jax.random.normal(k_out, (B, C), dtype=jnp.float32)     # student logits
    labels = jax.random.randint(k_lbl, (B,), 0, C, dtype=jnp.int32)   # class ids
    w_teacher = jax.random.normal(k_w, (D, C), dtype=jnp.float32) * 0.1
    b_teacher = jax.random.normal(k_b, (1, C), dtype=jnp.float32) * 0.1

    ok = True
    for dtype_ in ("soft", "hard", "none"):
        loss = distillation_loss_module(
            inputs, outputs, labels, w_teacher, b_teacher,
            distillation_type=dtype_, alpha=alpha, tau=tau,
        )
        loss = jax.block_until_ready(loss)
        ref = _ref(inputs, outputs, labels, w_teacher, b_teacher,
                   dtype_, alpha, tau)
        # tolerance accounts for the approx-reciprocal in the soft path
        if not jnp.allclose(loss, ref, atol=1e-3, rtol=1e-3):
            ok = False

    if ok:
        print("KERNEL_OK")
</pallas_src>

<mosaic_0001>
module attributes {stable_mosaic.version = 11 : i64} {
  func.func @kernel(%arg0: i32, %arg1: memref<8x32xf32, #tpu.memory_space<vmem>>, %arg2: memref<32x128xf32, #tpu.memory_space<vmem>>, %arg3: memref<1x128xf32, #tpu.memory_space<vmem>>, %arg4: memref<8x128xf32, #tpu.memory_space<vmem>>, %arg5: memref<8x1xi32, #tpu.memory_space<vmem>>, %arg6: memref<1x1xf32, #tpu.memory_space<smem>>) attributes {dimension_semantics = [#tpu.dimension_semantics<arbitrary>], iteration_bounds = array<i64: 1>, scalar_prefetch = 0 : i64, scratch_operands = 0 : i64, tpu.core_type = #tpu.core_type<tc>, window_params = [{transform_indices = @transform_0, window_bounds = array<i64: 8, 32>}, {pipeline_mode = #tpu.pipeline_mode<synchronous>, transform_indices = @transform_1, window_bounds = array<i64: 32, 128>}, {pipeline_mode = #tpu.pipeline_mode<synchronous>, transform_indices = @transform_2, window_bounds = array<i64: 1, 128>}, {transform_indices = @transform_3, window_bounds = array<i64: 8, 128>}, {transform_indices = @transform_4, window_bounds = array<i64: 8, 1>}, {transform_indices = @transform_5, window_bounds = array<i64: 1, 1>}]} {
    %c0 = arith.constant 0 : index
    %c0_0 = arith.constant 0 : index
    %0 = vector.load %arg1[%c0, %c0_0] : memref<8x32xf32, #tpu.memory_space<vmem>>, vector<8x32xf32>
    %c0_1 = arith.constant 0 : index
    %c0_2 = arith.constant 0 : index
    %1 = vector.load %arg2[%c0_1, %c0_2] : memref<32x128xf32, #tpu.memory_space<vmem>>, vector<32x128xf32>
    %cst = arith.constant dense<0.000000e+00> : vector<8x128xf32>
    %2 = tpu.matmul %0, %1, %cst {dimension_numbers = #tpu.dot_dimension_numbers<[1], [0], [0], [1], [0, 0, 1, 1], [], []>} : vector<8x32xf32>, vector<32x128xf32>, vector<8x128xf32> -> vector<8x128xf32>
    %c0_3 = arith.constant 0 : index
    %c0_4 = arith.constant 0 : index
    %3 = vector.load %arg3[%c0_3, %c0_4] : memref<1x128xf32, #tpu.memory_space<vmem>>, vector<1x128xf32>
    %4 = vector.broadcast %3 : vector<1x128xf32> to vector<8x128xf32>
    %5 = arith.addf %2, %4 : vector<8x128xf32>
    %c0_5 = arith.constant 0 : index
    %c0_6 = arith.constant 0 : index
    %6 = vector.load %arg4[%c0_5, %c0_6] : memref<8x128xf32, #tpu.memory_space<vmem>>, vector<8x128xf32>
    %c0_7 = arith.constant 0 : index
    %c0_8 = arith.constant 0 : index
    %7 = vector.load %arg5[%c0_7, %c0_8] : memref<8x1xi32, #tpu.memory_space<vmem>>, vector<8x1xi32>
    %c0_i32 = arith.constant 0 : i32
    %8 = arith.cmpi eq, %arg0, %c0_i32 : i32
    %9 = arith.extui %8 : i1 to i32
    %c0_i32_9 = arith.constant 0 : i32
    %10 = arith.cmpi ne, %9, %c0_i32_9 : i32
    scf.if %10 {
      %cst_27 = arith.constant 0.000000e+00 : f32
      %c0_28 = arith.constant 0 : index
      %c0_29 = arith.constant 0 : index
      %76 = memref.load %arg6[%c0_28, %c0_29] : memref<1x1xf32, #tpu.memory_space<smem>>
      memref.store %cst_27, %arg6[%c0_28, %c0_29] : memref<1x1xf32, #tpu.memory_space<smem>>
    } else {
    }
    %11 = tpu.iota {dimensions = array<i32: 1>} : vector<8x128xi32>
    %12 = vector.broadcast %7 : vector<8x1xi32> to vector<8x128xi32>
    %13 = arith.cmpi eq, %11, %12 : vector<8x128xi32>
    %14 = arith.extui %13 : vector<8x128xi1> to vector<8x128xi32>
    %15 = arith.sitofp %14 : vector<8x128xi32> to vector<8x128xf32>
    %cst_10 = arith.constant dense<0xFF800000> : vector<8xf32>
    %16 = vector.multi_reduction <maximumf>, %6, %cst_10 [1] : vector<8x128xf32> to vector<8xf32>
    %17 = vector.shape_cast %16 : vector<8xf32> to vector<8x1xf32>
    %18 = vector.broadcast %17 : vector<8x1xf32> to vector<8x128xf32>
    %19 = arith.subf %6, %18 : vector<8x128xf32>
    %20 = math.exp %19 : vector<8x128xf32>
    %cst_11 = arith.constant dense<0.000000e+00> : vector<8xf32>
    %21 = vector.multi_reduction <add>, %20, %cst_11 [1] : vector<8x128xf32> to vector<8xf32>
    %22 = vector.shape_cast %21 : vector<8xf32> to vector<8x1xf32>
    %23 = math.log %22 : vector<8x1xf32>
    %24 = vector.broadcast %23 : vector<8x1xf32> to vector<8x128xf32>
    %25 = arith.subf %19, %24 : vector<8x128xf32>
    %26 = arith.mulf %15, %25 : vector<8x128xf32>
    %27 = vector.shape_cast %26 : vector<8x128xf32> to vector<1x8x128xf32>
    %cst_12 = arith.constant dense<0.000000e+00> : vector<1xf32>
    %28 = vector.multi_reduction <add>, %27, %cst_12 [1, 2] : vector<1x8x128xf32> to vector<1xf32>
    %29 = vector.shape_cast %28 : vector<1xf32> to vector<1x1x1xf32>
    %30 = vector.extract %29[0, 0, 0] : f32 from vector<1x1x1xf32>
    %cst_13 = arith.constant 0.000000e+00 : f32
    %31 = arith.subf %cst_13, %30 : f32
    %cst_14 = arith.constant 5.000000e-01 : f32
    %32 = vector.broadcast %cst_14 : f32 to vector<8x128xf32>
    %33 = arith.mulf %19, %32 : vector<8x128xf32>
    %34 = math.exp %33 : vector<8x128xf32>
    %cst_15 = arith.constant dense<0.000000e+00> : vector<8xf32>
    %35 = vector.multi_reduction <add>, %34, %cst_15 [1] : vector<8x128xf32> to vector<8xf32>
    %36 = vector.shape_cast %35 : vector<8xf32> to vector<8x1xf32>
    %37 = math.log %36 : vector<8x1xf32>
    %38 = vector.broadcast %37 : vector<8x1xf32> to vector<8x128xf32>
    %39 = arith.subf %33, %38 : vector<8x128xf32>
    %cst_16 = arith.constant dense<0xFF800000> : vector<8xf32>
    %40 = vector.multi_reduction <maximumf>, %5, %cst_16 [1] : vector<8x128xf32> to vector<8xf32>
    %41 = vector.shape_cast %40 : vector<8xf32> to vector<8x1xf32>
    %42 = vector.broadcast %41 : vector<8x1xf32> to vector<8x128xf32>
    %43 = arith.subf %5, %42 : vector<8x128xf32>
    %cst_17 = arith.constant 5.000000e-01 : f32
    %44 = vector.broadcast %cst_17 : f32 to vector<8x128xf32>
    %45 = arith.mulf %43, %44 : vector<8x128xf32>
    %46 = math.exp %45 : vector<8x128xf32>
    %cst_18 = arith.constant dense<0.000000e+00> : vector<8xf32>
    %47 = vector.multi_reduction <add>, %46, %cst_18 [1] : vector<8x128xf32> to vector<8xf32>
    %48 = vector.shape_cast %47 : vector<8xf32> to vector<8x1xf32>
    %49 = math.log %48 : vector<8x1xf32>
    %50 = vector.broadcast %49 : vector<8x1xf32> to vector<8x128xf32>
    %51 = arith.subf %45, %50 : vector<8x128xf32>
    %c8_i32 = arith.constant 8 : i32
    %52 = arith.muli %arg0, %c8_i32 : i32
    %53 = tpu.iota {dimensions = array<i32: 0>} : vector<8x1xi32>
    %54 = vector.broadcast %52 : i32 to vector<8x1xi32>
    %55 = arith.addi %54, %53 : vector<8x1xi32>
    %c8_i32_19 = arith.constant 8 : i32
    %56 = vector.broadcast %c8_i32_19 : i32 to vector<8x1xi32>
    %57 = arith.cmpi slt, %55, %56 : vector<8x1xi32>
    %58 = arith.extui %57 : vector<8x1xi1> to vector<8x1xi32>
    %59 = arith.sitofp %58 : vector<8x1xi32> to vector<8x1xf32>
    %60 = tpu.reciprocal %48 {approx = true} : vector<8x1xf32> -> vector<8x1xf32>
    %61 = arith.mulf %60, %59 : vector<8x1xf32>
    %62 = vector.broadcast %61 : vector<8x1xf32> to vector<8x128xf32>
    %63 = arith.mulf %46, %62 : vector<8x128xf32>
    %64 = arith.subf %51, %39 : vector<8x128xf32>
    %65 = arith.mulf %63, %64 : vector<8x128xf32>
    %66 = vector.shape_cast %65 : vector<8x128xf32> to vector<1x8x128xf32>
    %cst_20 = arith.constant dense<0.000000e+00> : vector<1xf32>
    %67 = vector.multi_reduction <add>, %66, %cst_20 [1, 2] : vector<1x8x128xf32> to vector<1xf32>
    %68 = vector.shape_cast %67 : vector<1xf32> to vector<1x1x1xf32>
    %69 = vector.extract %68[0, 0, 0] : f32 from vector<1x1x1xf32>
    %cst_21 = arith.constant 6.250000e-02 : f32
    %70 = arith.mulf %cst_21, %31 : f32
    %cst_22 = arith.constant 1.562500e-02 : f32
    %71 = arith.mulf %cst_22, %69 : f32
    %72 = arith.addf %70, %71 : f32
    %c0_23 = arith.constant 0 : index
    %c0_24 = arith.constant 0 : index
    %73 = memref.load %arg6[%c0_23, %c0_24] : memref<1x1xf32, #tpu.memory_space<smem>>
    %74 = arith.addf %73, %72 : f32
    %c0_25 = arith.constant 0 : index
    %c0_26 = arith.constant 0 : index
    %75 = memref.load %arg6[%c0_25, %c0_26] : memref<1x1xf32, #tpu.memory_space<smem>>
    memref.store %74, %arg6[%c0_25, %c0_26] : memref<1x1xf32, #tpu.memory_space<smem>>
    return
  }
  func.func @transform_0(%arg0: i32) -> (i32, i32) {
    %c0_i32 = arith.constant 0 : i32
    %c0_i32_0 = arith.constant 0 : i32
    return %arg0, %c0_i32 : i32, i32
  }
  func.func @transform_1(%arg0: i32) -> (i32, i32) {
    %c0_i32 = arith.constant 0 : i32
    %c0_i32_0 = arith.constant 0 : i32
    %c0_i32_1 = arith.constant 0 : i32
    return %c0_i32, %c0_i32_0 : i32, i32
  }
  func.func @transform_2(%arg0: i32) -> (i32, i32) {
    %c0_i32 = arith.constant 0 : i32
    %c0_i32_0 = arith.constant 0 : i32
    %c0_i32_1 = arith.constant 0 : i32
    return %c0_i32, %c0_i32_0 : i32, i32
  }
  func.func @transform_3(%arg0: i32) -> (i32, i32) {
    %c0_i32 = arith.constant 0 : i32
    %c0_i32_0 = arith.constant 0 : i32
    return %arg0, %c0_i32 : i32, i32
  }
  func.func @transform_4(%arg0: i32) -> (i32, i32) {
    %c0_i32 = arith.constant 0 : i32
    %c0_i32_0 = arith.constant 0 : i32
    return %arg0, %c0_i32 : i32, i32
  }
  func.func @transform_5(%arg0: i32) -> (i32, i32) {
    %c0_i32 = arith.constant 0 : i32
    %c0_i32_0 = arith.constant 0 : i32
    %c0_i32_1 = arith.constant 0 : i32
    return %c0_i32, %c0_i32_0 : i32, i32
  }
}

</mosaic_0001>

<llo_original>
// kernel: tpu_custom_call.1
$region0: #{tpu_custom_call.1}
  #allocation0 [shape = 'u32[]', space=smem, size = 0x4, offset = 0x4, fixed_abs, tag = 'smem constant byte address 0x4 - core index']
  #allocation1 [shape = 'u32[72,128]{1,0:T(1,128)}', space=vmem, size = 0x9000, scoped, tag = 'internal scratch']
  %s0 = inlined_call_operand.vmem [shape: f32[8,32], index: 0, kind: input, shape index: {}]
  %s1 = inlined_call_operand.hbm [shape: f32[32,128], index: 1, kind: input, shape index: {}]
  %s2 = inlined_call_operand.vmem [shape: f32[1,128], index: 2, kind: input, shape index: {}]
  %s3 = inlined_call_operand.hbm [shape: f32[8,128], index: 3, kind: input, shape index: {}]
  %s4 = inlined_call_operand.vmem [shape: s32[8,1], index: 4, kind: input, shape index: {}]
  %s5 = inlined_call_operand.hbm [shape: f32[1,1], index: 5, kind: output, shape index: {}]
  %s6 = sld [smem:[#allocation0]]
  $region42: #{tpu_custom_call.1} parent=0
    _
  %s8 = ssub.s32 1, %s6
  %s9 = scalar_select 0, %s8, %s6
  $region1: #{tpu_custom_call.1} parent=0
    #allocation2 [shape = 'u8[16384]{0}', space=vmem, size = 0x4000, scoped, tag = 'input window, operand 1, single buffered']
    #allocation3 [shape = 's32[1]{0}', space=sflag, size = 0x4, scoped, tag = 'scoped memory for tpu_custom_call.1']
    #allocation4 [shape = 's32[1]{0}', space=sflag, size = 0x4, scoped, tag = 'scoped memory for tpu_custom_call.1']
    #allocation5 [shape = 'u8[4096]{0}', space=vmem, size = 0x1000, scoped, tag = 'input window, operand 3, single buffered']
    #allocation6 [shape = 's32[1]{0}', space=sflag, size = 0x4, scoped, tag = 'scoped memory for tpu_custom_call.1']
    #allocation7 [shape = 'u8[512]{0}', space=smem, size = 0x200, scoped, tag = 'output window, operand 0, single buffered']
    %10 = vsyncpa [#allocation3], 0
    %11 = vsyncpa [#allocation6], 0
    %12 = vsyncpa [#allocation4], 0
    // Predicated region
    $region2: #{tpu_custom_call.1} parent=1 // pred_check
      _
    $region3: #{tpu_custom_call.1} parent=1 // pred_check_branch
      %14 = sbr.rel (0) target = $region5
    $region4: #{tpu_custom_call.1} parent=1 // pred_region
      _
    $region5: #{tpu_custom_call.1} parent=1 // pred_fallthru
      _
    // Predicated region
    $region6: #{tpu_custom_call.1} parent=1 // pred_check
      _
    $region7: #{tpu_custom_call.1} parent=1 // pred_check_branch
      %16 = sbr.rel (0) target = $region9
    $region8: #{tpu_custom_call.1} parent=1 // pred_region
      %18 = vsyncadd [#allocation3], 0
      %s19 = sshll.u32 %s1, 4
      %s20 = int_to_ptr.hbm [resolvable:$true] %s19
      %s21 = sshll.u32 [#allocation2], 4
      %s22 = int_to_ptr.vmem [resolvable:$true] %s21
      %27 = dma.hbm_to_vmem [thread:$0]  %s20, 512, %s22, [#allocation3], 128, 128, 8
    $region9: #{tpu_custom_call.1} parent=1 // pred_fallthru
      _
    // Predicated region
    $region10: #{tpu_custom_call.1} parent=1 // pred_check
      _
    $region11: #{tpu_custom_call.1} parent=1 // pred_check_branch
      %29 = sbr.rel (0) target = $region13
    $region12: #{tpu_custom_call.1} parent=1 // pred_region
      _
    $region13: #{tpu_custom_call.1} parent=1 // pred_fallthru
      _
    // Predicated region
    $region14: #{tpu_custom_call.1} parent=1 // pred_check
      _
    $region15: #{tpu_custom_call.1} parent=1 // pred_check_branch
      %31 = sbr.rel (0) target = $region17
    $region16: #{tpu_custom_call.1} parent=1 // pred_region
      %33 = vsyncadd [#allocation6], 0
      %s35 = sshll.u32 %s3, 4
      %s36 = int_to_ptr.hbm [resolvable:$true] %s35
      %s37 = sshll.u32 [#allocation5], 4
      %s38 = int_to_ptr.vmem [resolvable:$true] %s37
      %40 = dma.hbm_to_vmem [thread:$0]  %s36, 128, %s38, [#allocation6]
    $region17: #{tpu_custom_call.1} parent=1 // pred_fallthru
      _
    // Predicated region
    $region18: #{tpu_custom_call.1} parent=1 // pred_check
      _
    $region19: #{tpu_custom_call.1} parent=1 // pred_check_branch
      %42 = sbr.rel (0) target = $region21
    $region20: #{tpu_custom_call.1} parent=1 // pred_region
      _
    $region21: #{tpu_custom_call.1} parent=1 // pred_fallthru
      _
    // Predicated region
    $region22: #{tpu_custom_call.1} parent=1 // pred_check
      _
    $region23: #{tpu_custom_call.1} parent=1 // pred_check_branch
      %44 = sbr.rel (0) target = $region25
    $region24: #{tpu_custom_call.1} parent=1 // pred_region
      %46 = dma.done [#allocation3], 512
    $region25: #{tpu_custom_call.1} parent=1 // pred_fallthru
      _
    // Predicated region
    $region26: #{tpu_custom_call.1} parent=1 // pred_check
      _
    $region27: #{tpu_custom_call.1} parent=1 // pred_check_branch
      %48 = sbr.rel (0) target = $region29
    $region28: #{tpu_custom_call.1} parent=1 // pred_region
      %50 = dma.done [#allocation6], 128
    $region29: #{tpu_custom_call.1} parent=1 // pred_fallthru
      _
    %v51 = vld [vmem:[%s0] sm:$0xff]
    %v52 = vld [vmem:[#allocation2] sm:$0xff]
    %v53 = vld [vmem:[#allocation2 + $0x8] sm:$0xff]
    %v54 = vld [vmem:[#allocation2 + $0x10] sm:$0xff]
    %v55 = vld [vmem:[#allocation2 + $0x18] sm:$0xff]
    %v56 = vld [vmem:[%s2] sm:$0x1]
    %v58 = vperm.slane %v56, 0
    %vm60 = vcmask 261120
    %v62 = vsel %vm60, %v51, 0
    %64 = vmatpush.msra.mxu0 0.0
    %65 = vmatpush.msra.mxu0 0.0
    %66 = vmatpush.msra.mxu0 0.0
    %67 = vmatpush.msra.mxu0 0.0
    %68 = vmatpush.msra.mxu0 0.0
    %69 = vmatpush.msra.mxu0 0.0
    %70 = vmatpush.msra.mxu0 0.0
    %71 = vmatpush.msra.mxu0 0.0
    %72 = vmatpush.msra.mxu0 0.0
    %73 = vmatpush.msra.mxu0 0.0
    %74 = vmatpush.msra.mxu0 0.0
    %75 = vmatpush.msra.mxu0 0.0
    %76 = vmatpush.msra.mxu0 %v55
    %77 = vmatpush.msra.mxu0 %v54
    %78 = vmatpush.msra.mxu0 %v53
    %79 = vmatpush.msra.mxu0 %v52
    %80 = vmatmul.f32.gmra.mxu0 %v62
    %v81 = vpop.f32.mrf.mxu0
    %v82 = vadd.f32 %v58, %v81
    %83 = vdwg.mxu0
    %v84 = vld [vmem:[#allocation5] sm:$0xff]
    %v85 = vld [vmem:[%s4] sm:$0xff]
    %p86 = scmp.eq.s32.totalorder 0, 0
    // Predicated region
    $region30: #{tpu_custom_call.1} parent=1 // pred_check
      %p87 = pneg %p86
    $region31: #{tpu_custom_call.1} parent=1 // pred_check_branch
      %89 = sbr.rel (%p87) target = $region33
    $region32: #{tpu_custom_call.1} parent=1 // pred_region
      %s90 = scalar_lea.smem [#allocation7], 0
      %91 = sst [smem:[%s90]] 0.0
    $region33: #{tpu_custom_call.1} parent=1 // pred_fallthru
      _
    %v92 = vlaneseq
    %v93 = vand.u32 %v92, 127
    %94 = vset.pattern.permute.xlu0 0
    %95 = vperm.xlu0 %94, %v85
    %v96 = vpop.permute.xlu0 %95
    %vm97 = vcmp.eq.s32.totalorder %v93, %v96
    %v98 = vsel %vm97, 1, 0
    %v99 = vcvt.s32.f32 %v98
    %100 = vmax.xlane.f32.xlu0 %v84
    %v101 = vpop.xlane.xlu0 %100
    %v102 = vsub.f32 %v84, %v101
    %v103 = vmul.f32 %v102, 1.442695
    %v104 = vpow.pop %v103
    %105 = vadd.xlane.f32.xlu0 %v104
    %v106 = vpop.xlane.xlu0 %105
    %v107 = vlog2.pop %v106
    %v108 = vmul.f32 %v107, 0.6931472
    %v109 = vsub.f32 %v102, %v108
    %v110 = vmul.f32 %v99, %v109
    %111 = vadd.xlane.f32.xlu0 %v110
    %v112 = vpop.xlane.xlu0 %111
    %v113 = vrot.slane %v112, 4
    %v114 = vadd.f32 %v112, %v113
    %v115 = vrot.slane %v114, 2
    %v116 = vadd.f32 %v114, %v115
    %v117 = vrot.slane %v116, 1
    %v118 = vadd.f32 %v116, %v117
    %s119 = vtos %v118
    %s120 = ssub.f32 0.0, %s119
    %v121 = vmul.f32 %v102, 0.5
    %v122 = vmul.f32 %v121, 1.442695
    %v123 = vpow.pop %v122
    %124 = vadd.xlane.f32.xlu0 %v123
    %v125 = vpop.xlane.xlu0 %124
    %v126 = vlog2.pop %v125
    %v127 = vmul.f32 %v126, 0.6931472
    %v128 = vsub.f32 %v121, %v127
    %129 = vmax.xlane.f32.xlu0 %v82
    %v130 = vpop.xlane.xlu0 %129
    %v131 = vsub.f32 %v82, %v130
    %v132 = vmul.f32 %v131, 0.5
    %v133 = vmul.f32 %v132, 1.442695
    %v134 = vpow.pop %v133
    %135 = vadd.xlane.f32.xlu0 %v134
    %v136 = vpop.xlane.xlu0 %135
    %v137 = vlog2.pop %v136
    %v138 = vmul.f32 %v137, 0.6931472
    %v139 = vsub.f32 %v132, %v138
    %s140 = smul.u32 0, 8
    %v141 = vlaneseq
    %v142 = vshrl.u32 %v141, 7
    %v143 = vstv %s140
    %v144 = vadd.s32 %v143, %v142
    %vm145 = vcmp.lt.s32.totalorder %v144, 8
    %v146 = vsel %vm145, 1, 0
    %v147 = vcvt.s32.f32 %v146
    %v148 = vrcp.pop %v136
    %v149 = vmul.f32 %v148, %v147
    %v150 = vmul.f32 %v134, %v149
    %v151 = vsub.f32 %v139, %v128
    %v152 = vmul.f32 %v150, %v151
    %153 = vadd.xlane.f32.xlu0 %v152
    %v154 = vpop.xlane.xlu0 %153
    %v155 = vrot.slane %v154, 4
    %v156 = vadd.f32 %v154, %v155
    %v157 = vrot.slane %v156, 2
    %v158 = vadd.f32 %v156, %v157
    %v159 = vrot.slane %v158, 1
    %v160 = vadd.f32 %v158, %v159
    %s161 = vtos %v160
    %s162 = smul.f32 %s120, 0.0625
    %s163 = smul.f32 %s161, 0.015625
    %s164 = sadd.f32 %s162, %s163
    %s165 = sld [smem:[#allocation7]]
    %s166 = sadd.f32 %s165, %s164
    %s167 = scalar_lea.smem [#allocation7], 0
    %168 = sst [smem:[%s167]] %s166
    // Predicated region
    $region34: #{tpu_custom_call.1} parent=1 // pred_check
      _
    $region35: #{tpu_custom_call.1} parent=1 // pred_check_branch
      %170 = sbr.rel (0) target = $region37
    $region36: #{tpu_custom_call.1} parent=1 // pred_region
      %172 = vsyncadd [#allocation4], 0
      %s174 = sshll.u32 %s5, 4
      %s175 = int_to_ptr.hbm [resolvable:$true] %s174
      %177 = dma.smem_to_hbm [#allocation7], 16, %s175, [#allocation4]
    $region37: #{tpu_custom_call.1} parent=1 // pred_fallthru
      _
    // Predicated region
    $region38: #{tpu_custom_call.1} parent=1 // pred_check
      _
    $region39: #{tpu_custom_call.1} parent=1 // pred_check_branch
      %179 = sbr.rel (0) target = $region41
    $region40: #{tpu_custom_call.1} parent=1 // pred_region
      %181 = dma.done [#allocation4], 16
    $region41: #{tpu_custom_call.1} parent=1 // pred_fallthru
      _
    %182 = sfence
    %183 = vsyncpa [#allocation3], 1
    %184 = vsyncpa [#allocation6], 1
    %185 = vsyncpa [#allocation4], 1

</llo_original>
